<compile_context>
chip_gen: v7x
topology: tpu7x:2x2x1
jax: 0.10.0
libtpu: 0.0.40
codegen_flags: <defaults>
</compile_context>

<pallas_src>
import jax
import jax.numpy as jnp
from jax import lax
from jax.experimental import pallas as pl
from jax.experimental.pallas import tpu as pltpu


def _round_up(x, m):
    return ((x + m - 1) // m) * m


def _choose_tiles(B, S_pad, D, itemsize):
    """Pick (BB, TS, num_tiles): batch rows per block, seq tile, #seq tiles."""
    # Sequence tile: largest multiple of 8 dividing S_pad, capped at 256.
    TS = S_pad
    if TS > 256:
        for cand in (256, 128, 64, 32, 16, 8):
            if S_pad % cand == 0:
                TS = cand
                break
    # Batch block: largest of (8, 4, 2, 1) dividing B (no batch padding).
    BB = 1
    for cand in (8, 4, 2):
        if B % cand == 0:
            BB = cand
            break
    # Keep the (double-buffered) output tile comfortably inside scoped VMEM.
    while BB > 1 and BB * TS * D * itemsize > (4 << 20):
        BB //= 2
    num_tiles = S_pad // TS
    # v7x has 2 TensorCores: make sure there are >= 2 parallel grid steps.
    while (B // BB) * num_tiles < 2 and BB > 1:
        BB //= 2
    if (B // BB) * num_tiles < 2:
        for cand in (S_pad // 2, 128, 64, 32, 16, 8):
            if cand >= 8 and cand % 8 == 0 and cand < S_pad and S_pad % cand == 0:
                TS = cand
                num_tiles = S_pad // TS
                break
    return BB, TS, num_tiles


def _embed_kernel(ids_ref, pos_start_ref, tok_hbm, pemb_ref, out_ref, sem):
    """One (batch-block, seq-tile) step.

    ids_ref       : SMEM (B*S_pad,) int32        token ids (scalar prefetch)
    pos_start_ref : SMEM (B*num_tiles,) int32    position start per (row, tile)
    tok_hbm       : HBM  (V, D)                  token table (pl.ANY, manual DMA)
    pemb_ref      : VMEM (P_pad, D)              position table, resident block
    out_ref       : VMEM (BB, TS, D)             output tile (rows DMA'd in place)
    sem           : single DMA semaphore (byte counts accumulate across copies)
    """
    i = pl.program_id(0)              # batch-block index
    j = pl.program_id(1)              # seq-tile index
    num_tiles = pl.num_programs(1)
    BB, TS, _ = out_ref.shape
    S_pad = num_tiles * TS
    unroll = min(TS, 8)

    # 1) Issue all BB*TS row-gather DMAs against the single semaphore,
    #    writing each token's embedding row directly into its output slot.
    for bb in range(BB):              # static: BB known at trace time
        row_base = (i * BB + bb) * S_pad + j * TS

        def issue(s, carry, bb=bb, row_base=row_base):
            tid = ids_ref[row_base + s]
            pltpu.make_async_copy(
                tok_hbm.at[pl.ds(tid, 1), :],
                out_ref.at[bb, pl.ds(s, 1), :],
                sem,
            ).start()
            return carry

        lax.fori_loop(0, TS, issue, 0, unroll=unroll)

    # 2) Cumulative waits: each descriptor is exactly TS rows (the bytes one
    #    batch row's gathers contribute), so after BB waits every copy issued
    #    in this step has landed.  All waits happen before any data is read.
    for bb in range(BB):
        pltpu.make_async_copy(
            tok_hbm.at[pl.ds(0, TS), :],
            out_ref.at[bb],
            sem,
        ).wait()

    # 3) In-place position add: contiguous run of TS rows of the resident
    #    position table per batch row (arange-style position ids).
    for bb in range(BB):
        ps = pos_start_ref[(i * BB + bb) * num_tiles + j]
        pos_tile = pemb_ref[pl.ds(ps, TS), :]              # (TS, D)
        out_ref[bb, :, :] = (out_ref[bb, :, :] + pos_tile).astype(out_ref.dtype)


def clip_text_embeddings(input_ids, tok_table, pos_table, position_ids=None):
    """JAX wrapper mirroring CLIPTextEmbeddings.forward
    (inputs_embeds=None, style_embeds=None path)."""
    B, S = input_ids.shape
    V, D = tok_table.shape
    P = pos_table.shape[0]
    itemsize = jnp.dtype(tok_table.dtype).itemsize

    S_pad = _round_up(S, 8)
    BB, TS, num_tiles = _choose_tiles(B, S_pad, D, itemsize)
    assert V >= TS, "cumulative wait descriptor needs vocab_size >= seq tile"

    # Token ids: clamp (avoid silent OOB HBM gathers) and pad the sequence.
    ids = jnp.clip(input_ids.astype(jnp.int32), 0, V - 1)
    if S_pad != S:
        ids = jnp.pad(ids, ((0, 0), (0, S_pad - S)))
    ids_flat = ids.reshape(-1)                                    # (B*S_pad,)

    # Position ids (default: the module's registered arange buffer).
    if position_ids is None:
        pos_ids = jnp.broadcast_to(
            jnp.arange(S_pad, dtype=jnp.int32)[None, :], (B, S_pad))
    else:
        pos_ids = jnp.broadcast_to(position_ids.astype(jnp.int32), (B, S))
        if S_pad != S:
            pos_ids = jnp.pad(pos_ids, ((0, 0), (0, S_pad - S)))

    # Pad position table so every contiguous TS-row slice is in bounds; match
    # the token-table dtype so the in-kernel add stays single-dtype.
    P_pad = max(_round_up(P, 8), S_pad)
    pos_table_p = jnp.pad(pos_table.astype(tok_table.dtype),
                          ((0, P_pad - P), (0, 0)))

    # Start row of each (batch row, seq tile) position slice.
    pos_start = jnp.clip(pos_ids[:, ::TS].reshape(-1), 0, P_pad - TS)

    cost = pl.CostEstimate(
        flops=B * S_pad * D,
        transcendentals=0,
        bytes_accessed=(2 * B * S_pad + P_pad) * D * itemsize)

    grid_spec = pltpu.PrefetchScalarGridSpec(
        num_scalar_prefetch=2,
        grid=(B // BB, num_tiles),
        in_specs=[
            pl.BlockSpec(memory_space=pl.ANY),                       # token table in HBM
            pl.BlockSpec((P_pad, D), lambda i, j, ids, ps: (0, 0)),  # resident pos table
        ],
        out_specs=pl.BlockSpec((BB, TS, D), lambda i, j, ids, ps: (i, j, 0)),
        scratch_shapes=[
            pltpu.SemaphoreType.DMA(()),    # single sem; bytes accumulate
        ],
    )

    out_padded = pl.pallas_call(
        _embed_kernel,
        out_shape=jax.ShapeDtypeStruct((B, S_pad, D), tok_table.dtype),
        grid_spec=grid_spec,
        compiler_params=pltpu.CompilerParams(
            dimension_semantics=("parallel", "parallel")),
        cost_estimate=cost,
    )(ids_flat, pos_start, tok_table, pos_table_p)

    return out_padded[:, :S, :]


if __name__ == "__main__":
    # Small synthetic config: vocab=128, max_position_embeddings=16,
    # hidden_size=128, batch=2, seq=8.
    B, S = 2, 8
    V, P, D = 128, 16, 128

    key = jax.random.PRNGKey(0)
    k_tok, k_pos, k_ids, k_ids2, k_ids3 = jax.random.split(key, 5)

    tok_table = jax.random.normal(k_tok, (V, D), dtype=jnp.float32) * 0.02
    pos_table = jax.random.normal(k_pos, (P, D), dtype=jnp.float32) * 0.02

    input_ids = jax.random.randint(k_ids, (B, S), 0, V, dtype=jnp.int32)
    out = jax.block_until_ready(
        clip_text_embeddings(input_ids, tok_table, pos_table))
    ref = tok_table[input_ids] + pos_table[jnp.arange(S)][None, :, :]
    assert out.shape == (B, S, D)
    assert jnp.allclose(out, ref, atol=1e-6), "mismatch vs reference (B=2,S=8)"

    # Non-multiple-of-8 sequence length exercises the padding path.
    S2 = 5
    input_ids2 = jax.random.randint(k_ids2, (1, S2), 0, V, dtype=jnp.int32)
    out2 = jax.block_until_ready(
        clip_text_embeddings(input_ids2, tok_table, pos_table))
    ref2 = tok_table[input_ids2] + pos_table[jnp.arange(S2)][None, :, :]
    assert out2.shape == (1, S2, D)
    assert jnp.allclose(out2, ref2, atol=1e-6), "mismatch vs reference (S=5)"

    # Larger batch exercises the batch-folding (BB > 1) path.
    B3 = 8
    input_ids3 = jax.random.randint(k_ids3, (B3, S), 0, V, dtype=jnp.int32)
    out3 = jax.block_until_ready(
        clip_text_embeddings(input_ids3, tok_table, pos_table))
    ref3 = tok_table[input_ids3] + pos_table[jnp.arange(S)][None, :, :]
    assert out3.shape == (B3, S, D)
    assert jnp.allclose(out3, ref3, atol=1e-6), "mismatch vs reference (B=8)"

    print("KERNEL_OK")
</pallas_src>

<mosaic_0001>
module attributes {stable_mosaic.version = 11 : i64} {
  func.func @_embed_kernel(%arg0: i32, %arg1: i32, %arg2: memref<16xi32, #tpu.memory_space<smem>>, %arg3: memref<2xi32, #tpu.memory_space<smem>>, %arg4: memref<128x128xf32, #tpu.memory_space<any>>, %arg5: memref<16x128xf32, #tpu.memory_space<vmem>>, %arg6: memref<1x8x128xf32, #tpu.memory_space<vmem>>, %arg7: memref<!tpu.dma_semaphore, #tpu.memory_space<semaphore_mem>>) attributes {dimension_semantics = [#tpu.dimension_semantics<parallel>, #tpu.dimension_semantics<parallel>], iteration_bounds = array<i64: 2, 1>, scalar_prefetch = 2 : i64, scratch_operands = 1 : i64, tpu.core_type = #tpu.core_type<tc>, window_params = [{}, {pipeline_mode = #tpu.pipeline_mode<synchronous>, transform_indices = @transform_1, window_bounds = array<i64: 16, 128>}, {transform_indices = @transform_2, window_bounds = array<i64: 1, 8, 128>}]} {
    %c1_i32 = arith.constant 1 : i32
    %0 = arith.muli %arg0, %c1_i32 : i32
    %c0_i32 = arith.constant 0 : i32
    %1 = arith.addi %0, %c0_i32 : i32
    %c8_i32 = arith.constant 8 : i32
    %2 = arith.muli %1, %c8_i32 : i32
    %c8_i32_0 = arith.constant 8 : i32
    %3 = arith.muli %arg1, %c8_i32_0 : i32
    %4 = arith.addi %2, %3 : i32
    %c0_i32_1 = arith.constant 0 : i32
    %5 = arith.addi %4, %c0_i32_1 : i32
    %6 = arith.index_cast %5 : i32 to index
    %7 = memref.load %arg2[%6] : memref<16xi32, #tpu.memory_space<smem>>
    %c0_i32_2 = arith.constant 0 : i32
    %c0_i32_3 = arith.constant 0 : i32
    %8 = tpu.memref_slice %arg4[%7, %c0_i32_3] : memref<128x128xf32, #tpu.memory_space<any>> -> memref<1x128xf32, #tpu.memory_space<any>>
    %c0_i32_4 = arith.constant 0 : i32
    %9 = tpu.memref_slice %arg6[%c0_i32_2, %c0_i32_1, %c0_i32_4] : memref<1x8x128xf32, #tpu.memory_space<vmem>> -> memref<1x1x128xf32, #tpu.memory_space<vmem>>
    %10 = tpu.memref_squeeze %9 : memref<1x1x128xf32, #tpu.memory_space<vmem>> -> memref<1x128xf32, #tpu.memory_space<vmem>>
    tpu.enqueue_dma source(%8 : memref<1x128xf32, #tpu.memory_space<any>>) target(%10 : memref<1x128xf32, #tpu.memory_space<vmem>>) target_semaphore(%arg7 : memref<!tpu.dma_semaphore, #tpu.memory_space<semaphore_mem>>)
    %c1_i32_5 = arith.constant 1 : i32
    %11 = arith.addi %4, %c1_i32_5 : i32
    %12 = arith.index_cast %11 : i32 to index
    %13 = memref.load %arg2[%12] : memref<16xi32, #tpu.memory_space<smem>>
    %c0_i32_6 = arith.constant 0 : i32
    %c0_i32_7 = arith.constant 0 : i32
    %14 = tpu.memref_slice %arg4[%13, %c0_i32_7] : memref<128x128xf32, #tpu.memory_space<any>> -> memref<1x128xf32, #tpu.memory_space<any>>
    %c0_i32_8 = arith.constant 0 : i32
    %15 = tpu.memref_slice %arg6[%c0_i32_6, %c1_i32_5, %c0_i32_8] : memref<1x8x128xf32, #tpu.memory_space<vmem>> -> memref<1x1x128xf32, #tpu.memory_space<vmem>>
    %16 = tpu.memref_squeeze %15 : memref<1x1x128xf32, #tpu.memory_space<vmem>> -> memref<1x128xf32, #tpu.memory_space<vmem>>
    tpu.enqueue_dma source(%14 : memref<1x128xf32, #tpu.memory_space<any>>) target(%16 : memref<1x128xf32, #tpu.memory_space<vmem>>) target_semaphore(%arg7 : memref<!tpu.dma_semaphore, #tpu.memory_space<semaphore_mem>>)
    %c2_i32 = arith.constant 2 : i32
    %17 = arith.addi %4, %c2_i32 : i32
    %18 = arith.index_cast %17 : i32 to index
    %19 = memref.load %arg2[%18] : memref<16xi32, #tpu.memory_space<smem>>
    %c0_i32_9 = arith.constant 0 : i32
    %c0_i32_10 = arith.constant 0 : i32
    %20 = tpu.memref_slice %arg4[%19, %c0_i32_10] : memref<128x128xf32, #tpu.memory_space<any>> -> memref<1x128xf32, #tpu.memory_space<any>>
    %c0_i32_11 = arith.constant 0 : i32
    %21 = tpu.memref_slice %arg6[%c0_i32_9, %c2_i32, %c0_i32_11] : memref<1x8x128xf32, #tpu.memory_space<vmem>> -> memref<1x1x128xf32, #tpu.memory_space<vmem>>
    %22 = tpu.memref_squeeze %21 : memref<1x1x128xf32, #tpu.memory_space<vmem>> -> memref<1x128xf32, #tpu.memory_space<vmem>>
    tpu.enqueue_dma source(%20 : memref<1x128xf32, #tpu.memory_space<any>>) target(%22 : memref<1x128xf32, #tpu.memory_space<vmem>>) target_semaphore(%arg7 : memref<!tpu.dma_semaphore, #tpu.memory_space<semaphore_mem>>)
    %c3_i32 = arith.constant 3 : i32
    %23 = arith.addi %4, %c3_i32 : i32
    %24 = arith.index_cast %23 : i32 to index
    %25 = memref.load %arg2[%24] : memref<16xi32, #tpu.memory_space<smem>>
    %c0_i32_12 = arith.constant 0 : i32
    %c0_i32_13 = arith.constant 0 : i32
    %26 = tpu.memref_slice %arg4[%25, %c0_i32_13] : memref<128x128xf32, #tpu.memory_space<any>> -> memref<1x128xf32, #tpu.memory_space<any>>
    %c0_i32_14 = arith.constant 0 : i32
    %27 = tpu.memref_slice %arg6[%c0_i32_12, %c3_i32, %c0_i32_14] : memref<1x8x128xf32, #tpu.memory_space<vmem>> -> memref<1x1x128xf32, #tpu.memory_space<vmem>>
    %28 = tpu.memref_squeeze %27 : memref<1x1x128xf32, #tpu.memory_space<vmem>> -> memref<1x128xf32, #tpu.memory_space<vmem>>
    tpu.enqueue_dma source(%26 : memref<1x128xf32, #tpu.memory_space<any>>) target(%28 : memref<1x128xf32, #tpu.memory_space<vmem>>) target_semaphore(%arg7 : memref<!tpu.dma_semaphore, #tpu.memory_space<semaphore_mem>>)
    %c4_i32 = arith.constant 4 : i32
    %29 = arith.addi %4, %c4_i32 : i32
    %30 = arith.index_cast %29 : i32 to index
    %31 = memref.load %arg2[%30] : memref<16xi32, #tpu.memory_space<smem>>
    %c0_i32_15 = arith.constant 0 : i32
    %c0_i32_16 = arith.constant 0 : i32
    %32 = tpu.memref_slice %arg4[%31, %c0_i32_16] : memref<128x128xf32, #tpu.memory_space<any>> -> memref<1x128xf32, #tpu.memory_space<any>>
    %c0_i32_17 = arith.constant 0 : i32
    %33 = tpu.memref_slice %arg6[%c0_i32_15, %c4_i32, %c0_i32_17] : memref<1x8x128xf32, #tpu.memory_space<vmem>> -> memref<1x1x128xf32, #tpu.memory_space<vmem>>
    %34 = tpu.memref_squeeze %33 : memref<1x1x128xf32, #tpu.memory_space<vmem>> -> memref<1x128xf32, #tpu.memory_space<vmem>>
    tpu.enqueue_dma source(%32 : memref<1x128xf32, #tpu.memory_space<any>>) target(%34 : memref<1x128xf32, #tpu.memory_space<vmem>>) target_semaphore(%arg7 : memref<!tpu.dma_semaphore, #tpu.memory_space<semaphore_mem>>)
    %c5_i32 = arith.constant 5 : i32
    %35 = arith.addi %4, %c5_i32 : i32
    %36 = arith.index_cast %35 : i32 to index
    %37 = memref.load %arg2[%36] : memref<16xi32, #tpu.memory_space<smem>>
    %c0_i32_18 = arith.constant 0 : i32
    %c0_i32_19 = arith.constant 0 : i32
    %38 = tpu.memref_slice %arg4[%37, %c0_i32_19] : memref<128x128xf32, #tpu.memory_space<any>> -> memref<1x128xf32, #tpu.memory_space<any>>
    %c0_i32_20 = arith.constant 0 : i32
    %39 = tpu.memref_slice %arg6[%c0_i32_18, %c5_i32, %c0_i32_20] : memref<1x8x128xf32, #tpu.memory_space<vmem>> -> memref<1x1x128xf32, #tpu.memory_space<vmem>>
    %40 = tpu.memref_squeeze %39 : memref<1x1x128xf32, #tpu.memory_space<vmem>> -> memref<1x128xf32, #tpu.memory_space<vmem>>
    tpu.enqueue_dma source(%38 : memref<1x128xf32, #tpu.memory_space<any>>) target(%40 : memref<1x128xf32, #tpu.memory_space<vmem>>) target_semaphore(%arg7 : memref<!tpu.dma_semaphore, #tpu.memory_space<semaphore_mem>>)
    %c6_i32 = arith.constant 6 : i32
    %41 = arith.addi %4, %c6_i32 : i32
    %42 = arith.index_cast %41 : i32 to index
    %43 = memref.load %arg2[%42] : memref<16xi32, #tpu.memory_space<smem>>
    %c0_i32_21 = arith.constant 0 : i32
    %c0_i32_22 = arith.constant 0 : i32
    %44 = tpu.memref_slice %arg4[%43, %c0_i32_22] : memref<128x128xf32, #tpu.memory_space<any>> -> memref<1x128xf32, #tpu.memory_space<any>>
    %c0_i32_23 = arith.constant 0 : i32
    %45 = tpu.memref_slice %arg6[%c0_i32_21, %c6_i32, %c0_i32_23] : memref<1x8x128xf32, #tpu.memory_space<vmem>> -> memref<1x1x128xf32, #tpu.memory_space<vmem>>
    %46 = tpu.memref_squeeze %45 : memref<1x1x128xf32, #tpu.memory_space<vmem>> -> memref<1x128xf32, #tpu.memory_space<vmem>>
    tpu.enqueue_dma source(%44 : memref<1x128xf32, #tpu.memory_space<any>>) target(%46 : memref<1x128xf32, #tpu.memory_space<vmem>>) target_semaphore(%arg7 : memref<!tpu.dma_semaphore, #tpu.memory_space<semaphore_mem>>)
    %c7_i32 = arith.constant 7 : i32
    %47 = arith.addi %4, %c7_i32 : i32
    %48 = arith.index_cast %47 : i32 to index
    %49 = memref.load %arg2[%48] : memref<16xi32, #tpu.memory_space<smem>>
    %c0_i32_24 = arith.constant 0 : i32
    %c0_i32_25 = arith.constant 0 : i32
    %50 = tpu.memref_slice %arg4[%49, %c0_i32_25] : memref<128x128xf32, #tpu.memory_space<any>> -> memref<1x128xf32, #tpu.memory_space<any>>
    %c0_i32_26 = arith.constant 0 : i32
    %51 = tpu.memref_slice %arg6[%c0_i32_24, %c7_i32, %c0_i32_26] : memref<1x8x128xf32, #tpu.memory_space<vmem>> -> memref<1x1x128xf32, #tpu.memory_space<vmem>>
    %52 = tpu.memref_squeeze %51 : memref<1x1x128xf32, #tpu.memory_space<vmem>> -> memref<1x128xf32, #tpu.memory_space<vmem>>
    tpu.enqueue_dma source(%50 : memref<1x128xf32, #tpu.memory_space<any>>) target(%52 : memref<1x128xf32, #tpu.memory_space<vmem>>) target_semaphore(%arg7 : memref<!tpu.dma_semaphore, #tpu.memory_space<semaphore_mem>>)
    %c8_i32_27 = arith.constant 8 : i32
    %c0_i32_28 = arith.constant 0 : i32
    %c0_i32_29 = arith.constant 0 : i32
    %c0_i32_30 = arith.constant 0 : i32
    %53 = tpu.memref_slice %arg4[%c0_i32_29, %c0_i32_30] : memref<128x128xf32, #tpu.memory_space<any>> -> memref<8x128xf32, #tpu.memory_space<any>>
    %c0_i32_31 = arith.constant 0 : i32
    %c0_i32_32 = arith.constant 0 : i32
    %54 = tpu.memref_slice %arg6[%c0_i32_28, %c0_i32_31, %c0_i32_32] : memref<1x8x128xf32, #tpu.memory_space<vmem>> -> memref<1x8x128xf32, #tpu.memory_space<vmem>>
    %55 = tpu.memref_squeeze %54 : memref<1x8x128xf32, #tpu.memory_space<vmem>> -> memref<8x128xf32, #tpu.memory_space<vmem>>
    tpu.wait_dma2 semaphore(%arg7 : memref<!tpu.dma_semaphore, #tpu.memory_space<semaphore_mem>>) src(%53 : memref<8x128xf32, #tpu.memory_space<any>>) dst(%55 : memref<8x128xf32, #tpu.memory_space<vmem>>)
    %c1_i32_33 = arith.constant 1 : i32
    %56 = arith.muli %arg0, %c1_i32_33 : i32
    %c0_i32_34 = arith.constant 0 : i32
    %57 = arith.addi %56, %c0_i32_34 : i32
    %c1_i32_35 = arith.constant 1 : i32
    %58 = arith.muli %57, %c1_i32_35 : i32
    %59 = arith.addi %58, %arg1 : i32
    %60 = arith.index_cast %59 : i32 to index
    %61 = memref.load %arg3[%60] : memref<2xi32, #tpu.memory_space<smem>>
    %62 = arith.index_cast %61 : i32 to index
    %c0 = arith.constant 0 : index
    %63 = vector.load %arg5[%62, %c0] : memref<16x128xf32, #tpu.memory_space<vmem>>, vector<8x128xf32>
    %c0_36 = arith.constant 0 : index
    %c0_37 = arith.constant 0 : index
    %c0_38 = arith.constant 0 : index
    %64 = vector.load %arg6[%c0_36, %c0_37, %c0_38] : memref<1x8x128xf32, #tpu.memory_space<vmem>>, vector<1x8x128xf32>
    %65 = vector.shape_cast %64 : vector<1x8x128xf32> to vector<8x128xf32>
    %66 = arith.addf %65, %63 : vector<8x128xf32>
    %c0_39 = arith.constant 0 : index
    %c0_40 = arith.constant 0 : index
    %c0_41 = arith.constant 0 : index
    %67 = vector.load %arg6[%c0_39, %c0_40, %c0_41] : memref<1x8x128xf32, #tpu.memory_space<vmem>>, vector<1x8x128xf32>
    %68 = vector.shape_cast %67 : vector<1x8x128xf32> to vector<8x128xf32>
    %69 = vector.shape_cast %66 : vector<8x128xf32> to vector<1x8x128xf32>
    tpu.vector_store %arg6[%c0_39, %c0_40, %c0_41], %69 {strides = array<i32>} : memref<1x8x128xf32, #tpu.memory_space<vmem>>, vector<1x8x128xf32>,
    return
  }
  func.func @transform_1(%arg0: i32, %arg1: i32, %arg2: memref<16xi32, #tpu.memory_space<smem>>, %arg3: memref<2xi32, #tpu.memory_space<smem>>) -> (i32, i32) {
    %c0_i32 = arith.constant 0 : i32
    %c0_i32_0 = arith.constant 0 : i32
    %c0_i32_1 = arith.constant 0 : i32
    return %c0_i32, %c0_i32_0 : i32, i32
  }
  func.func @transform_2(%arg0: i32, %arg1: i32, %arg2: memref<16xi32, #tpu.memory_space<smem>>, %arg3: memref<2xi32, #tpu.memory_space<smem>>) -> (i32, i32, i32) {
    %c0_i32 = arith.constant 0 : i32
    %c0_i32_0 = arith.constant 0 : i32
    return %arg0, %arg1, %c0_i32 : i32, i32, i32
  }
}

</mosaic_0001>

<llo_original>
// kernel: tpu_custom_call.1
$region0: #{tpu_custom_call.1}
  #allocation0 [shape = 'u32[]', space=smem, size = 0x4, offset = 0x4, fixed_abs, tag = 'smem constant byte address 0x4 - core index']
  #allocation1 [shape = 'u32[144,128]{1,0:T(1,128)}', space=vmem, size = 0x12000, scoped, tag = 'internal scratch']
  #allocation2 [shape = 's32[1]{0}', space=sflag, size = 0x4, scoped, tag = 'scratch operand']
  #allocation3 [shape = 's32[1]{0}', space=sflag, size = 0x4, scoped, tag = 'scoped memory for tpu_custom_call.1']
  #allocation4 [shape = 'u8[512]{0}', space=smem, size = 0x200, scoped, tag = 'prefetched SMEM operand 0']
  #allocation5 [shape = 'u8[512]{0}', space=smem, size = 0x200, scoped, tag = 'prefetched SMEM operand 1']
  #allocation10 [shape = 's32[]', space=sflag, size = 0x4, offset = 0, fixed_abs, tag = 'sflag constant byte address 0x0 - dummy sync flag']
  #allocation11 [shape = 's32[]', space=sflag, size = 0x4, offset = 0, fixed_abs, tag = 'sflag constant byte address 0x0 - dummy sync flag']
  #allocation12 [shape = 'u32[]', space=smem, size = 0x4, offset = 0x44, fixed_abs, tag = 'smem constant byte address 0x44 - assertion arg 0']
  #allocation13 [shape = 'u32[]', space=smem, size = 0x4, offset = 0x48, fixed_abs, tag = 'smem constant byte address 0x48 - assertion arg 1']
  #allocation14 [shape = 's32[]', space=sflag, size = 0x4, offset = 0, fixed_abs, tag = 'sflag constant byte address 0x0 - dummy sync flag']
  #allocation15 [shape = 's32[]', space=sflag, size = 0x4, offset = 0, fixed_abs, tag = 'sflag constant byte address 0x0 - dummy sync flag']
  #allocation16 [shape = 's32[]', space=sflag, size = 0x4, offset = 0, fixed_abs, tag = 'sflag constant byte address 0x0 - dummy sync flag']
  #allocation17 [shape = 's32[]', space=sflag, size = 0x4, offset = 0, fixed_abs, tag = 'sflag constant byte address 0x0 - dummy sync flag']
  #allocation18 [shape = 's32[]', space=sflag, size = 0x4, offset = 0, fixed_abs, tag = 'sflag constant byte address 0x0 - dummy sync flag']
  #allocation19 [shape = 's32[]', space=sflag, size = 0x4, offset = 0, fixed_abs, tag = 'sflag constant byte address 0x0 - dummy sync flag']
  #allocation20 [shape = 's32[]', space=sflag, size = 0x4, offset = 0, fixed_abs, tag = 'sflag constant byte address 0x0 - dummy sync flag']
  #allocation21 [shape = 's32[]', space=sflag, size = 0x4, offset = 0, fixed_abs, tag = 'sflag constant byte address 0x0 - dummy sync flag']
  #allocation22 [shape = 's32[]', space=sflag, size = 0x4, offset = 0, fixed_abs, tag = 'sflag constant byte address 0x0 - dummy sync flag']
  #allocation23 [shape = 's32[]', space=sflag, size = 0x4, offset = 0, fixed_abs, tag = 'sflag constant byte address 0x0 - dummy sync flag']
  #allocation24 [shape = 's32[]', space=sflag, size = 0x4, offset = 0, fixed_abs, tag = 'sflag constant byte address 0x0 - dummy sync flag']
  #allocation25 [shape = 's32[]', space=sflag, size = 0x4, offset = 0, fixed_abs, tag = 'sflag constant byte address 0x0 - dummy sync flag']
  #allocation26 [shape = 's32[]', space=sflag, size = 0x4, offset = 0, fixed_abs, tag = 'sflag constant byte address 0x0 - dummy sync flag']
  #allocation27 [shape = 's32[]', space=sflag, size = 0x4, offset = 0, fixed_abs, tag = 'sflag constant byte address 0x0 - dummy sync flag']
  %s0 = inlined_call_operand.hbm [shape: s32[16], index: 0, kind: input, shape index: {}]
  %s1 = inlined_call_operand.vmem [shape: s32[2], index: 1, kind: input, shape index: {}]
  %s2 = inlined_call_operand.hbm [shape: f32[128,128], index: 2, kind: input, shape index: {}]
  %s3 = inlined_call_operand.hbm [shape: f32[16,128], index: 3, kind: input, shape index: {}]
  %s4 = inlined_call_operand.hbm [shape: f32[2,8,128], index: 4, kind: output, shape index: {}]
  %s5 = sld [smem:[#allocation0]]
  $region73: #{tpu_custom_call.1} parent=0
    _
  %s7 = ssub.s32 1, %s5
  %s8 = scalar_select 0, %s7, %s5
  %10 = dma.hbm_to_smem %s0, 16, [#allocation4], [#allocation3]
  %s11 = sshll.u32 %s1, 4
  %s12 = int_to_ptr.vmem [resolvable:$true] %s11
  %14 = dma.vmem_to_smem %s12, 16, [#allocation5], [#allocation3]
  %15 = dma.done [#allocation3], 32
  %16 = sfence
  $region1: #{tpu_custom_call.1} parent=0
    #allocation6 [shape = 'u8[8192]{0}', space=vmem, size = 0x2000, scoped, tag = 'input window, operand 3, single buffered']
    #allocation7 [shape = 's32[2]{0}', space=sflag, size = 0x8, scoped, tag = 'scoped memory for tpu_custom_call.1']
    #allocation8 [shape = 's32[2]{0}', space=sflag, size = 0x8, scoped, tag = 'scoped memory for tpu_custom_call.1']
    #allocation9 [shape = 'u8[8192]{0}', space=vmem, size = 0x2000, scoped, tag = 'output window, operand 0']
    %17 = vsyncpa [#allocation7], 0
    %18 = vsyncpa [#allocation8], 0
    %s19 = scalar_lea.sflag [#allocation8], 1
    %20 = vsyncpa %s19, 0
    loop: start=0, step=1, limit=4
    $region2: #{tpu_custom_call.1} parent=1 // loop_pre_header
      _
    $region3: #{tpu_custom_call.1} parent=1 // loop_header
      %s22 = sphi 0, %s26
      %p23 = scmp.ge.s32.totalorder %s22, 4
      %s29 = sphi 0, %s41
      %s30 = sphi 0, %s37
      %s31 = sphi 0, %s29
      %s32 = sphi 0, %s30
      %s33 = sphi 0, %s31
      %s34 = sphi 0, %s32
      %s42 = sphi 0, %s42
      %s44 = sphi 0, %s42
      %s45 = sphi 0, %s44
      %s59 = sphi 0, %s45
      %s67 = sphi 0, %s69
      %s70 = sphi 0, %s67
      %s71 = sphi 0, %s70
      %s87 = sphi 0, %s71
    $region4: #{tpu_custom_call.1} parent=1 // loop_header_branch
      %25 = sbr.rel (%p23) target = $region8
    $region5: #{tpu_custom_call.1} parent=1 // loop_body
      %s27 = ssub.s32 %s22, 1
      %s28 = ssub.s32 %s22, 2
      %s35 = sadd.s32 1, %s30
      %p36 = scmp.ge.s32.totalorder %s35, 1
      %s37 = scalar_select %p36, 0, %s35
      %s38 = sadd.s32 1, %s29
      %s39 = scalar_select %p36, %s38, %s29
      %p40 = scmp.ge.s32.totalorder %s39, 2
      %s41 = scalar_select %p40, 0, %s39
      %s43 = sadd.s32 %s42, 1
      %p46 = scmp.eq.s32.totalorder %s22, 1
      %p47 = scmp.ne.s32.totalorder %s42, %s44
      %p48 = scmp.eq.s32.totalorder %s22, 0
      %p49 = por %p47, %p48
      %p50 = scmp.ne.s32.totalorder %s42, %s44
      %p51 = scmp.eq.s32.totalorder %s27, 1
      %p52 = por %p50, %p51
      %p53 = scmp.ne.s32.totalorder %s44, %s45
      %p54 = scmp.eq.s32.totalorder %s27, 0
      %p55 = por %p53, %p54
      %p56 = scmp.ne.s32.totalorder %s44, %s45
      %p57 = scmp.eq.s32.totalorder %s28, 1
      %p58 = por %p56, %p57
      %p60 = scmp.ne.s32.totalorder %s45, %s59
      %p61 = scmp.eq.s32.totalorder %s28, 0
      %p62 = por %p60, %p61
      %s63 = ssub.s32 %s29, %s41
      %s64 = ssub.s32 %s30, %s37
      %s65 = sor.u32 %s63, %s64
      %p66 = scmp.eq.s32.totalorder %s65, 0
      %s68 = sadd.s32 %s67, 1
      %s69 = scalar_select %p66, %s67, %s68
      %p72 = pneg %p66
      %p73 = scmp.eq.s32.totalorder %s22, 1
      %p74 = por %p72, %p73
      %p75 = scmp.ne.s32.totalorder %s67, %s70
      %p76 = scmp.eq.s32.totalorder %s22, 0
      %p77 = por %p75, %p76
      %p78 = scmp.ne.s32.totalorder %s67, %s70
      %p79 = scmp.eq.s32.totalorder %s27, 1
      %p80 = por %p78, %p79
      %p81 = scmp.ne.s32.totalorder %s70, %s71
      %p82 = scmp.eq.s32.totalorder %s27, 0
      %p83 = por %p81, %p82
      %p84 = scmp.ne.s32.totalorder %s70, %s71
      %p85 = scmp.eq.s32.totalorder %s28, 1
      %p86 = por %p84, %p85
      %p88 = scmp.ne.s32.totalorder %s71, %s87
      %p89 = scmp.eq.s32.totalorder %s28, 0
      %p90 = por %p88, %p89
      %p91 = scmp.le.s32.totalorder 1, %s22
      %p92 = scmp.lt.s32.totalorder %s22, 3
      %p93 = pnand %p91, %p92
      %p94 = pneg %p93
      // Predicated region
      $region9: #{tpu_custom_call.1} parent=5 // pred_check
        _
      $region10: #{tpu_custom_call.1} parent=5 // pred_check_branch
        %96 = sbr.rel (%p93) target = $region12
      $region11: #{tpu_custom_call.1} parent=5 // pred_region
        %s97 = ssub.s32 %s22, 1
        // Predicated region
        $region13: #{tpu_custom_call.1} parent=11 // pred_check
          %p98 = pneg %p55
        $region14: #{tpu_custom_call.1} parent=11 // pred_check_branch
          %100 = sbr.rel (%p98) target = $region16
        $region15: #{tpu_custom_call.1} parent=11 // pred_region
          %s102 = ssub.s32 256, 256
          %103 = vsyncadd [#allocation7], %s102
          %s104 = sshll.u32 [#allocation6], 4
          %s105 = int_to_ptr.vmem [resolvable:$true] %s104
          %110 = dma.hbm_to_vmem [thread:$0]  %s3, 256, %s105, [#allocation7], 128, 128, 8
        $region16: #{tpu_custom_call.1} parent=11 // pred_fallthru
          _
      $region12: #{tpu_custom_call.1} parent=5 // pred_fallthru
        _
      %p111 = scmp.lt.s32.totalorder %s22, 2
      // Predicated region
      $region17: #{tpu_custom_call.1} parent=5 // pred_check
        %p112 = pneg %p111
      $region18: #{tpu_custom_call.1} parent=5 // pred_check_branch
        %114 = sbr.rel (%p112) target = $region20
      $region19: #{tpu_custom_call.1} parent=5 // pred_region
        _
      $region20: #{tpu_custom_call.1} parent=5 // pred_fallthru
        _
      %p115 = scmp.le.s32.totalorder 1, %s22
      %p116 = scmp.lt.s32.totalorder %s22, 3
      %p117 = pnand %p115, %p116
      %p118 = pneg %p117
      // Predicated region
      $region21: #{tpu_custom_call.1} parent=5 // pred_check
        _
      $region22: #{tpu_custom_call.1} parent=5 // pred_check_branch
        %120 = sbr.rel (%p117) target = $region24
      $region23: #{tpu_custom_call.1} parent=5 // pred_region
        %s121 = ssub.s32 %s22, 1
        // Predicated region
        $region25: #{tpu_custom_call.1} parent=23 // pred_check
          %p122 = pneg %p55
        $region26: #{tpu_custom_call.1} parent=23 // pred_check_branch
          %124 = sbr.rel (%p122) target = $region28
        $region27: #{tpu_custom_call.1} parent=23 // pred_region
          %125 = dma.done [#allocation7], 256
        $region28: #{tpu_custom_call.1} parent=23 // pred_fallthru
          _
        %p126 = pneg %p55
        %p127 = pneg %p52
        %p128 = pneg %p83
        %p129 = pneg %p80
        %s130 = sand.u32 %s70, 1
        %s131 = scalar_lea.sflag [#allocation8], %s130
        %s132 = sand.u32 %s70, 1
        %s133 = smul.addr %s132, 8
        %s134 = scalar_lea.vmem [#allocation9], %s133
        %s135 = smul.u32 %s31, 8
        %s136 = smul.u32 %s32, 8
        %s137 = sadd.s32 %s135, %s136
        %s138 = sld [smem:[#allocation4 + %s137]]
        %s139 = smul.addr %s138, 16
        %s140 = scalar_lea.hbm %s2, %s139
        // Predicated region
        $region29: #{tpu_custom_call.1} parent=23 // pred_check
          _
        $region30: #{tpu_custom_call.1} parent=23 // pred_check_branch
          %142 = sbr.rel target = $region32
        $region31: #{tpu_custom_call.1} parent=23 // pred_region
          %143 = sst [smem:[#allocation12]] [#allocation11]
          %144 = sst [smem:[#allocation13]] [#allocation10]
        $region32: #{tpu_custom_call.1} parent=23 // pred_fallthru
          _
        %146 = shalt.err (0)
        %s148 = sshll.u32 %s134, 4
        %s149 = int_to_ptr.vmem [resolvable:$true] %s148
        %151 = dma.hbm_to_vmem [thread:$0]  %s140, 16, %s149, [#allocation2]
        %s152 = sadd.s32 %s137, 1
        %s153 = sld [smem:[#allocation4 + %s152]]
        %s154 = smul.addr %s153, 16
        %s155 = scalar_lea.hbm %s2, %s154
        %s156 = scalar_lea.vmem %s134, 1 [#allocation9]
        // Predicated region
        $region33: #{tpu_custom_call.1} parent=23 // pred_check
          _
        $region34: #{tpu_custom_call.1} parent=23 // pred_check_branch
          %158 = sbr.rel target = $region36
        $region35: #{tpu_custom_call.1} parent=23 // pred_region
          %159 = sst [smem:[#allocation12]] [#allocation15]
          %160 = sst [smem:[#allocation13]] [#allocation14]
        $region36: #{tpu_custom_call.1} parent=23 // pred_fallthru
          _
        %162 = shalt.err (0)
        %s164 = sshll.u32 %s156, 4
        %s165 = int_to_ptr.vmem [resolvable:$true] %s164
        %167 = dma.hbm_to_vmem [thread:$0]  %s155, 16, %s165, [#allocation2]
        %s168 = sadd.s32 %s137, 2
        %s169 = sld [smem:[#allocation4 + %s168]]
        %s170 = smul.addr %s169, 16
        %s171 = scalar_lea.hbm %s2, %s170
        %s172 = scalar_lea.vmem %s134, 2 [#allocation9]
        // Predicated region
        $region37: #{tpu_custom_call.1} parent=23 // pred_check
          _
        $region38: #{tpu_custom_call.1} parent=23 // pred_check_branch
          %174 = sbr.rel target = $region40
        $region39: #{tpu_custom_call.1} parent=23 // pred_region
          %175 = sst [smem:[#allocation12]] [#allocation17]
          %176 = sst [smem:[#allocation13]] [#allocation16]
        $region40: #{tpu_custom_call.1} parent=23 // pred_fallthru
          _
        %178 = shalt.err (0)
        %s180 = sshll.u32 %s172, 4
        %s181 = int_to_ptr.vmem [resolvable:$true] %s180
        %183 = dma.hbm_to_vmem [thread:$0]  %s171, 16, %s181, [#allocation2]
        %s184 = sadd.s32 %s137, 3
        %s185 = sld [smem:[#allocation4 + %s184]]
        %s186 = smul.addr %s185, 16
        %s187 = scalar_lea.hbm %s2, %s186
        %s188 = scalar_lea.vmem %s134, 3 [#allocation9]
        // Predicated region
        $region41: #{tpu_custom_call.1} parent=23 // pred_check
          _
        $region42: #{tpu_custom_call.1} parent=23 // pred_check_branch
          %190 = sbr.rel target = $region44
        $region43: #{tpu_custom_call.1} parent=23 // pred_region
          %191 = sst [smem:[#allocation12]] [#allocation19]
          %192 = sst [smem:[#allocation13]] [#allocation18]
        $region44: #{tpu_custom_call.1} parent=23 // pred_fallthru
          _
        %194 = shalt.err (0)
        %s196 = sshll.u32 %s188, 4
        %s197 = int_to_ptr.vmem [resolvable:$true] %s196
        %199 = dma.hbm_to_vmem [thread:$0]  %s187, 16, %s197, [#allocation2]
        %s200 = sadd.s32 %s137, 4
        %s201 = sld [smem:[#allocation4 + %s200]]
        %s202 = smul.addr %s201, 16
        %s203 = scalar_lea.hbm %s2, %s202
        %s204 = scalar_lea.vmem %s134, 4 [#allocation9]
        // Predicated region
        $region45: #{tpu_custom_call.1} parent=23 // pred_check
          _
        $region46: #{tpu_custom_call.1} parent=23 // pred_check_branch
          %206 = sbr.rel target = $region48
        $region47: #{tpu_custom_call.1} parent=23 // pred_region
          %207 = sst [smem:[#allocation12]] [#allocation21]
          %208 = sst [smem:[#allocation13]] [#allocation20]
        $region48: #{tpu_custom_call.1} parent=23 // pred_fallthru
          _
        %210 = shalt.err (0)
        %s212 = sshll.u32 %s204, 4
        %s213 = int_to_ptr.vmem [resolvable:$true] %s212
        %215 = dma.hbm_to_vmem [thread:$0]  %s203, 16, %s213, [#allocation2]
        %s216 = sadd.s32 %s137, 5
        %s217 = sld [smem:[#allocation4 + %s216]]
        %s218 = smul.addr %s217, 16
        %s219 = scalar_lea.hbm %s2, %s218
        %s220 = scalar_lea.vmem %s134, 5 [#allocation9]
        // Predicated region
        $region49: #{tpu_custom_call.1} parent=23 // pred_check
          _
        $region50: #{tpu_custom_call.1} parent=23 // pred_check_branch
          %222 = sbr.rel target = $region52
        $region51: #{tpu_custom_call.1} parent=23 // pred_region
          %223 = sst [smem:[#allocation12]] [#allocation23]
          %224 = sst [smem:[#allocation13]] [#allocation22]
        $region52: #{tpu_custom_call.1} parent=23 // pred_fallthru
          _
        %226 = shalt.err (0)
        %s228 = sshll.u32 %s220, 4
        %s229 = int_to_ptr.vmem [resolvable:$true] %s228
        %231 = dma.hbm_to_vmem [thread:$0]  %s219, 16, %s229, [#allocation2]
        %s232 = sadd.s32 %s137, 6
        %s233 = sld [smem:[#allocation4 + %s232]]
        %s234 = smul.addr %s233, 16
        %s235 = scalar_lea.hbm %s2, %s234
        %s236 = scalar_lea.vmem %s134, 6 [#allocation9]
        // Predicated region
        $region53: #{tpu_custom_call.1} parent=23 // pred_check
          _
        $region54: #{tpu_custom_call.1} parent=23 // pred_check_branch
          %238 = sbr.rel target = $region56
        $region55: #{tpu_custom_call.1} parent=23 // pred_region
          %239 = sst [smem:[#allocation12]] [#allocation25]
          %240 = sst [smem:[#allocation13]] [#allocation24]
        $region56: #{tpu_custom_call.1} parent=23 // pred_fallthru
          _
        %242 = shalt.err (0)
        %s244 = sshll.u32 %s236, 4
        %s245 = int_to_ptr.vmem [resolvable:$true] %s244
        %247 = dma.hbm_to_vmem [thread:$0]  %s235, 16, %s245, [#allocation2]
        %s248 = sadd.s32 %s137, 7
        %s249 = sld [smem:[#allocation4 + %s248]]
        %s250 = smul.addr %s249, 16
        %s251 = scalar_lea.hbm %s2, %s250
        %s252 = scalar_lea.vmem %s134, 7 [#allocation9]
        // Predicated region
        $region57: #{tpu_custom_call.1} parent=23 // pred_check
          _
        $region58: #{tpu_custom_call.1} parent=23 // pred_check_branch
          %254 = sbr.rel target = $region60
        $region59: #{tpu_custom_call.1} parent=23 // pred_region
          %255 = sst [smem:[#allocation12]] [#allocation27]
          %256 = sst [smem:[#allocation13]] [#allocation26]
        $region60: #{tpu_custom_call.1} parent=23 // pred_fallthru
          _
        %258 = shalt.err (0)
        %s260 = sshll.u32 %s252, 4
        %s261 = int_to_ptr.vmem [resolvable:$true] %s260
        %263 = dma.hbm_to_vmem [thread:$0]  %s251, 16, %s261, [#allocation2]
        %s264 = smul.u32 8, 1
        %s265 = sshll.u32 %s264, 4
        %266 = dma.done [#allocation2], %s265
        %s267 = sadd.s32 %s31, %s32
        %s268 = sld [smem:[#allocation5 + %s267]]
        %s269 = scalar_lea.vmem [#allocation6], %s268
        %v270 = vld [vmem:[%s269] sm:$0xff]
        %v271 = vld [vmem:[%s134] sm:$0xff]
        %v272 = vadd.f32 %v271, %v270
        %273 = vst [vmem:[%s134] sm:$0xff] %v272
        %s274 = sand.u32 %s70, 1
        %s275 = scalar_lea.sflag [#allocation8], %s274
        %s276 = sand.u32 %s70, 1
        %s277 = smul.addr %s276, 8
        %s278 = scalar_lea.vmem [#allocation9], %s277
        // Predicated region
        $region61: #{tpu_custom_call.1} parent=23 // pred_check
          %p279 = pneg %p80
        $region62: #{tpu_custom_call.1} parent=23 // pred_check_branch
          %281 = sbr.rel (%p279) target = $region64
        $region63: #{tpu_custom_call.1} parent=23 // pred_region
          %s283 = ssub.s32 128, 128
          %284 = vsyncadd %s275, %s283
          %s285 = sadd.s32 %s32, %s31
          %s286 = smul.addr %s285, 128
          %s287 = scalar_lea.hbm %s4, %s286
          %s289 = sshll.u32 %s278, 4
          %s290 = int_to_ptr.vmem [resolvable:$true] %s289
          %292 = dma.vmem_to_hbm [thread:$0]  %s290, 128, %s287, %s275
        $region64: #{tpu_custom_call.1} parent=23 // pred_fallthru
          _
      $region24: #{tpu_custom_call.1} parent=5 // pred_fallthru
        _
      %p293 = scmp.le.s32.totalorder 2, %s22
      // Predicated region
      $region65: #{tpu_custom_call.1} parent=5 // pred_check
        %p294 = pneg %p293
      $region66: #{tpu_custom_call.1} parent=5 // pred_check_branch
        %296 = sbr.rel (%p294) target = $region68
      $region67: #{tpu_custom_call.1} parent=5 // pred_region
        %s297 = ssub.s32 %s22, 2
        // Predicated region
        $region69: #{tpu_custom_call.1} parent=67 // pred_check
          %p298 = pneg %p86
        $region70: #{tpu_custom_call.1} parent=67 // pred_check_branch
          %300 = sbr.rel (%p298) target = $region72
        $region71: #{tpu_custom_call.1} parent=67 // pred_region
          %s301 = sand.u32 %s71, 1
          %s302 = scalar_lea.sflag [#allocation8], %s301
          %s303 = sand.u32 %s71, 1
          %s304 = smul.addr %s303, 8
          %s305 = scalar_lea.vmem [#allocation9], %s304
          %306 = dma.done %s302, 128
        $region72: #{tpu_custom_call.1} parent=67 // pred_fallthru
          _
      $region68: #{tpu_custom_call.1} parent=5 // pred_fallthru
        _
    $region6: #{tpu_custom_call.1} parent=1 // loop_footer
      %s26 = sadd.s32 1, %s22
    $region7: #{tpu_custom_call.1} parent=1 // loop_footer_branch
      %21 = sbr.rel target = $region3
    $region8: #{tpu_custom_call.1} parent=1 // loop_exit
      _
    %307 = vsyncpa [#allocation7], 1
    %s308 = scalar_lea.sflag [#allocation7], 1
    %309 = vsyncpa %s308, 1
    %310 = vsyncpa [#allocation8], 1
    %s311 = scalar_lea.sflag [#allocation8], 1
    %312 = vsyncpa %s311, 1
  %313 = vsyncmov [#allocation2]
  %s314 = vpop.sfrf %313
  %p315 = scmp.eq.s32.totalorder %s314, 0
  %p316 = pneg %p315
  %318 = shalt.err (%p316)

</llo_original>
